<compile_context>
chip_gen: v6e
topology: v6e:2x2x1
jax: 0.10.0
libtpu: 0.0.40
codegen_flags: <defaults>
</compile_context>

<pallas_src>
import math
from functools import lru_cache

import jax
import jax.numpy as jnp
from jax.experimental import pallas as pl
from jax.experimental.pallas import tpu as pltpu


def _relu_kernel(x_ref, o_ref):
    # mod1 = nn.Identity() -> no-op ; mod2 = nn.ReLU() -> max(x, 0)
    o_ref[...] = jnp.maximum(x_ref[...], 0)


_MIB = 1024 * 1024

# generation -> (target tile bytes per buffer, vmem_limit_bytes override, TCs/chip)
_GEN_PARAMS = {
    "v7x": (8 * _MIB, 48 * _MIB, 2),   # ~3.2 TB/s HBM, 64 MiB VMEM, 2 TensorCores
    "v6e": (4 * _MIB, None, 1),        # fits 32 MiB default scoped VMEM, no flags
    "v5e": (2 * _MIB, None, 1),        # fits 16 MiB default scoped VMEM
    "other": (2 * _MIB, None, 1),      # conservative fallback (v4/v5p/unknown)
}


@lru_cache(maxsize=1)
def _generation_params():
    try:
        kind = jax.devices()[0].device_kind.lower()
    except Exception:
        kind = ""
    if "v7" in kind:
        return _GEN_PARAMS["v7x"]
    if "v6" in kind:
        return _GEN_PARAMS["v6e"]
    if "v5 lite" in kind or "v5lite" in kind or "v5e" in kind:
        return _GEN_PARAMS["v5e"]
    return _GEN_PARAMS["other"]


def _choose_layout(total: int, itemsize: int, target_tile_bytes: int, num_tc: int):
    """Pick (lanes, block_rows) for a lane-dense tile of ~target_tile_bytes."""
    # Sublane packing: 8 rows/vreg for 4-byte, 16 for 2-byte, 32 for 1-byte.
    sublane = max(8, 32 // itemsize)

    # Wider lane-dense rows only when the array spans many vregs at that
    # width; thresholds are in elements, so packed dtypes behave consistently.
    if total >= 1024 * sublane * 8:
        lanes = 1024
    elif total >= 512 * sublane * 8:
        lanes = 512
    else:
        lanes = 128

    rows = -(-total // lanes)
    rows_aligned = -(-rows // sublane) * sublane

    # Generation-aware tile: big enough to hide the ~0.35 us/step grid
    # overhead, small enough that double-buffered in+out fits scoped VMEM.
    target_rows = (target_tile_bytes // (lanes * itemsize)) // sublane * sublane
    target_rows = max(sublane, target_rows)
    block_rows = min(target_rows, rows_aligned)

    # On 2-TC chips, keep at least 2 grid steps for multi-vreg arrays so the
    # "parallel" grid axis can be sharded across both TensorCores.
    if num_tc >= 2 and rows_aligned > 2 * sublane:
        half_rows = max(sublane, (rows_aligned // 2) // sublane * sublane)
        block_rows = min(block_rows, half_rows)

    return lanes, block_rows


def submodule_forward(x: jax.Array, *, donate: bool = False) -> jax.Array:
    """SubModule.forward: Identity -> ReLU as a tiled, lane-dense Pallas kernel."""
    orig_shape = x.shape
    total = math.prod(orig_shape)
    if total == 0:
        return x  # ReLU on an empty tensor is a no-op

    itemsize = jnp.dtype(x.dtype).itemsize
    target_tile_bytes, vmem_limit_bytes, num_tc = _generation_params()
    lanes, block_rows = _choose_layout(total, itemsize, target_tile_bytes, num_tc)

    # Pad only to a multiple of `lanes` (< lanes elements). The common case
    # (total % lanes == 0) is fully zero-copy: the reshape is a bitcast and
    # the kernel output is returned directly, no pad/slice round-trips.
    x_flat = x.reshape(-1)
    pad = (-total) % lanes
    if pad:
        x_flat = jnp.pad(x_flat, (0, pad))
    rows = (total + pad) // lanes
    x2d = x_flat.reshape(rows, lanes)

    # Non-divisible grids are fine for elementwise ops: the boundary block's
    # out-of-bounds reads are discarded and its OOB writes are masked, so no
    # row padding up to a multiple of block_rows is needed.
    grid = (pl.cdiv(rows, block_rows),)

    out2d = pl.pallas_call(
        _relu_kernel,
        out_shape=jax.ShapeDtypeStruct((rows, lanes), x.dtype),
        grid=grid,
        in_specs=[pl.BlockSpec((block_rows, lanes), lambda i: (i, 0))],
        out_specs=pl.BlockSpec((block_rows, lanes), lambda i: (i, 0)),
        compiler_params=pltpu.CompilerParams(
            dimension_semantics=("parallel",),
            vmem_limit_bytes=vmem_limit_bytes,
        ),
        # ReLU is shape/dtype preserving: when the caller donates x, reuse its
        # buffer and avoid an extra HBM allocation around the call.
        input_output_aliases={0: 0} if donate else {},
    )(x2d)

    if pad:
        return out2d.reshape(-1)[:total].reshape(orig_shape)
    return out2d.reshape(orig_shape)


if __name__ == "__main__":
    key = jax.random.PRNGKey(0)
    k0, k1, k2, k3 = jax.random.split(key, 4)

    # Primary small NCHW input (zero-copy path: 2048 % 128 == 0).
    x = jax.random.normal(k0, (2, 4, 16, 16), dtype=jnp.float32)
    y = jax.block_until_ready(submodule_forward(x))
    assert y.shape == x.shape and y.dtype == x.dtype
    assert bool(jnp.allclose(y, jnp.maximum(x, 0.0))), "mismatch vs reference relu (f32)"

    # Ragged total: exercises lane-granular padding + masked boundary block.
    x2 = jax.random.normal(k1, (3, 5, 17, 19), dtype=jnp.float32)
    y2 = jax.block_until_ready(submodule_forward(x2))
    assert bool(jnp.allclose(y2, jnp.maximum(x2, 0.0))), "mismatch (ragged f32)"

    # Packed dtype: exercises dtype-aware sublane alignment (16 rows/vreg).
    x3 = jax.random.normal(k2, (2, 8, 32, 32), dtype=jnp.bfloat16)
    y3 = jax.block_until_ready(submodule_forward(x3))
    assert y3.dtype == jnp.bfloat16
    assert bool(jnp.all(y3 == jnp.maximum(x3, jnp.bfloat16(0)))), "mismatch (bf16)"

    # Larger (still small) input: exercises wide lanes, multi-step grid on
    # 2-TC chips, and the opt-in input/output aliasing path.
    x4 = jax.random.normal(k3, (4, 64, 512), dtype=jnp.float32)
    ref4 = jnp.maximum(x4, 0.0)
    y4 = jax.block_until_ready(submodule_forward(x4, donate=True))
    assert bool(jnp.allclose(y4, ref4)), "mismatch (donated f32)"

    # Empty input: early-return path (previously divided by zero).
    x5 = jnp.zeros((0, 4), dtype=jnp.float32)
    y5 = submodule_forward(x5)
    assert y5.shape == (0, 4) and y5.dtype == jnp.float32

    print("KERNEL_OK")
</pallas_src>

<mosaic_0001>
module attributes {stable_mosaic.version = 11 : i64} {
  func.func @_relu_kernel(%arg0: i32, %arg1: memref<16x128xf32, #tpu.memory_space<vmem>>, %arg2: memref<16x128xf32, #tpu.memory_space<vmem>>) attributes {dimension_semantics = [#tpu.dimension_semantics<parallel>], iteration_bounds = array<i64: 1>, scalar_prefetch = 0 : i64, scratch_operands = 0 : i64, tpu.core_type = #tpu.core_type<tc>, window_params = [{transform_indices = @transform_0, window_bounds = array<i64: 16, 128>}, {transform_indices = @transform_1, window_bounds = array<i64: 16, 128>}]} {
    %c0 = arith.constant 0 : index
    %c0_0 = arith.constant 0 : index
    %0 = vector.load %arg1[%c0, %c0_0] : memref<16x128xf32, #tpu.memory_space<vmem>>, vector<16x128xf32>
    %cst = arith.constant 0.000000e+00 : f32
    %1 = vector.broadcast %cst : f32 to vector<16x128xf32>
    %2 = arith.maximumf %0, %1 : vector<16x128xf32>
    %c0_1 = arith.constant 0 : index
    %c0_2 = arith.constant 0 : index
    %3 = vector.load %arg2[%c0_1, %c0_2] : memref<16x128xf32, #tpu.memory_space<vmem>>, vector<16x128xf32>
    tpu.vector_store %arg2[%c0_1, %c0_2], %2 {strides = array<i32>} : memref<16x128xf32, #tpu.memory_space<vmem>>, vector<16x128xf32>,
    return
  }
  func.func @transform_0(%arg0: i32) -> (i32, i32) {
    %c0_i32 = arith.constant 0 : i32
    %c0_i32_0 = arith.constant 0 : i32
    return %arg0, %c0_i32 : i32, i32
  }
  func.func @transform_1(%arg0: i32) -> (i32, i32) {
    %c0_i32 = arith.constant 0 : i32
    %c0_i32_0 = arith.constant 0 : i32
    return %arg0, %c0_i32 : i32, i32
  }
}

</mosaic_0001>

<llo_original>
// kernel: tpu_custom_call.1
$region0: #{tpu_custom_call.1}
  #allocation0 [shape = 'u32[]', space=smem, size = 0x4, offset = 0x4, fixed_abs, tag = 'smem constant byte address 0x4 - core index']
  #allocation1 [shape = 'u32[144,128]{1,0:T(1,128)}', space=vmem, size = 0x12000, scoped, tag = 'internal scratch']
  %s0 = inlined_call_operand.hbm [shape: f32[16,128], index: 0, kind: input, shape index: {}]
  %s1 = inlined_call_operand.hbm [shape: f32[16,128], index: 1, kind: output, shape index: {}]
  %s2 = sld [smem:[#allocation0]]
  $region18: #{tpu_custom_call.1} parent=0
    _
  %s4 = ssub.s32 1, %s2
  %s5 = scalar_select 0, %s4, %s2
  $region1: #{tpu_custom_call.1} parent=0
    #allocation2 [shape = 'u8[8192]{0}', space=vmem, size = 0x2000, scoped, tag = 'input window, operand 0, single buffered']
    #allocation3 [shape = 's32[1]{0}', space=sflag, size = 0x4, scoped, tag = 'scoped memory for tpu_custom_call.1']
    #allocation4 [shape = 's32[1]{0}', space=sflag, size = 0x4, scoped, tag = 'scoped memory for tpu_custom_call.1']
    #allocation5 [shape = 'u8[8192]{0}', space=vmem, size = 0x2000, scoped, tag = 'output window, operand 0, single buffered']
    %6 = vsyncpa [#allocation3], 0
    %7 = vsyncpa [#allocation4], 0
    // Predicated region
    $region2: #{tpu_custom_call.1} parent=1 // pred_check
      _
    $region3: #{tpu_custom_call.1} parent=1 // pred_check_branch
      %9 = sbr.rel (0) target = $region5
    $region4: #{tpu_custom_call.1} parent=1 // pred_region
      %s11 = ssub.s32 256, 256
      %12 = vsyncadd [#allocation3], %s11
      %s13 = sshll.u32 [#allocation2], 4
      %s14 = int_to_ptr.vmem [resolvable:$true] %s13
      %19 = dma.hbm_to_vmem [thread:$0]  %s0, 256, %s14, [#allocation3], 128, 128, 8
    $region5: #{tpu_custom_call.1} parent=1 // pred_fallthru
      _
    // Predicated region
    $region6: #{tpu_custom_call.1} parent=1 // pred_check
      _
    $region7: #{tpu_custom_call.1} parent=1 // pred_check_branch
      %21 = sbr.rel (0) target = $region9
    $region8: #{tpu_custom_call.1} parent=1 // pred_region
      %22 = dma.done [#allocation3], 256
    $region9: #{tpu_custom_call.1} parent=1 // pred_fallthru
      _
    %v23 = vld [vmem:[#allocation2] sm:$0xff]
    %v24 = vld [vmem:[#allocation2 + $0x8] sm:$0xff]
    %v25 = vmax.f32 %v23, 0.0
    %v26 = vmax.f32 %v24, 0.0
    %27 = vst [vmem:[#allocation5] sm:$0xff] %v25
    %28 = vst [vmem:[#allocation5 + $0x8] sm:$0xff] %v26
    // Predicated region
    $region10: #{tpu_custom_call.1} parent=1 // pred_check
      _
    $region11: #{tpu_custom_call.1} parent=1 // pred_check_branch
      %30 = sbr.rel (0) target = $region13
    $region12: #{tpu_custom_call.1} parent=1 // pred_region
      %s32 = ssub.s32 256, 256
      %33 = vsyncadd [#allocation4], %s32
      %s34 = sshll.u32 [#allocation5], 4
      %s35 = int_to_ptr.vmem [resolvable:$true] %s34
      %40 = dma.vmem_to_hbm [thread:$0]  %s35, 256, %s1, [#allocation4], 128, 128, 8
    $region13: #{tpu_custom_call.1} parent=1 // pred_fallthru
      _
    // Predicated region
    $region14: #{tpu_custom_call.1} parent=1 // pred_check
      _
    $region15: #{tpu_custom_call.1} parent=1 // pred_check_branch
      %42 = sbr.rel (0) target = $region17
    $region16: #{tpu_custom_call.1} parent=1 // pred_region
      %43 = dma.done [#allocation4], 256
    $region17: #{tpu_custom_call.1} parent=1 // pred_fallthru
      _
    %44 = vsyncpa [#allocation3], 1
    %45 = vsyncpa [#allocation4], 1

</llo_original>
